<compile_context>
chip_gen: v7x
topology: tpu7x:2x2x1
jax: 0.10.0
libtpu: 0.0.40
codegen_flags: <defaults>
</compile_context>

<pallas_src>
import math

import jax
import jax.numpy as jnp
from jax.experimental import pallas as pl
from jax.experimental.pallas import tpu as pltpu


def _round_up(x, m):
    return (x + m - 1) // m * m


def _pick_spatial_tile(hw, tile_hw):
    """Largest multiple of 128 <= tile_hw that divides hw (no padding needed)."""
    t = (min(tile_hw, hw) // 128) * 128
    while t >= 128:
        if hw % t == 0:
            return t
        t -= 128
    return None


def mask_kernel(e_ref, p_ref, o_ref):
    """o_tile = sigmoid(E @ P_tile).

    E = (num_masks, C) stays VMEM-resident across spatial tiles, P_tile =
    (C, tile). bf16 operands, f32 accumulation on the MXU, bf16 store.
    """
    logits = jnp.dot(e_ref[...], p_ref[...], preferred_element_type=jnp.float32)
    o_ref[...] = jax.nn.sigmoid(logits).astype(o_ref.dtype)


def mask_predictor_forward(mask_embeddings, per_pixel_embeddings, params,
                           mask_embedding_dim, num_masks, *, tile_hw=4096,
                           compute_dtype=jnp.bfloat16,
                           out_dtype=jnp.bfloat16):
    w1, b1, w2, b2 = params
    B, _ = mask_embeddings.shape
    _, C, H, W = per_pixel_embeddings.shape
    assert C == mask_embedding_dim

    # --- tiny MLP (fc1 -> relu -> fc2 -> relu): a few kFLOPs, left to XLA ----
    h = jnp.maximum(mask_embeddings @ w1 + b1, 0.0)
    e = jnp.maximum(h @ w2 + b2, 0.0).reshape(B, num_masks, C)       # (B, M, C)

    HW = H * W
    # bf16 matmul operands (f32 accumulate inside the kernel). In a real
    # pipeline per_pixel_embeddings would already arrive in bf16; astype is a
    # no-op in that case.
    e = e.astype(compute_dtype)
    p = per_pixel_embeddings.reshape(B, C, HW).astype(compute_dtype)  # (B, C, HW)

    # --- spatial tiling: prefer a 128-multiple tile that divides HW ----------
    tile = _pick_spatial_tile(HW, tile_hw)
    if tile is not None:
        HWp = HW                                   # no padding, no final slice
    else:
        # Rare ragged fallback (real MaskFormer H*W is a multiple of 128).
        tile = max(128, min((tile_hw // 128) * 128, _round_up(HW, 128)))
        HWp = _round_up(HW, tile)
        p = jnp.pad(p, ((0, 0), (0, 0), (0, HWp - HW)))

    n_hw = HWp // tile
    in_bytes = jnp.dtype(compute_dtype).itemsize
    out_bytes = jnp.dtype(out_dtype).itemsize
    flops = 2 * B * num_masks * C * HWp
    bytes_accessed = (in_bytes * (B * C * HWp + B * num_masks * C)
                      + out_bytes * B * num_masks * HWp)

    out = pl.pallas_call(
        mask_kernel,
        out_shape=jax.ShapeDtypeStruct((B, num_masks, HWp), out_dtype),
        grid=(B, n_hw),                            # spatial axis innermost
        in_specs=[
            # E: index_map invariant to the spatial axis -> stays VMEM-resident
            # across all spatial tiles of a batch element.
            pl.BlockSpec((pl.Squeezed(), num_masks, C), lambda b, s: (b, 0, 0)),
            # P tile: the only per-step HBM input stream.
            # (If profiling shows DMA bubbles at batch boundaries, add
            #  pipeline_mode=pl.Buffered(3) here.)
            pl.BlockSpec((pl.Squeezed(), C, tile), lambda b, s: (b, 0, s)),
        ],
        out_specs=pl.BlockSpec((pl.Squeezed(), num_masks, tile),
                               lambda b, s: (b, 0, s)),
        compiler_params=pltpu.CompilerParams(
            dimension_semantics=("parallel", "parallel")),
        cost_estimate=pl.CostEstimate(
            flops=flops, transcendentals=B * num_masks * HWp,
            bytes_accessed=bytes_accessed),
    )(e, p)

    if HWp != HW:
        out = out[:, :, :HW]
    return out.reshape(B, num_masks, H, W)


if __name__ == "__main__":
    # Small shapes consistent with the module's forward:
    #   mask_embeddings:      (B, segment_embedding_dim)
    #   per_pixel_embeddings: (B, mask_embedding_dim, H, W)   (NCHW)
    B = 2
    segment_embedding_dim = 8
    hidden_dim = 32
    mask_embedding_dim = 4
    num_masks = 8
    H = W = 16

    key = jax.random.PRNGKey(0)
    ks = jax.random.split(key, 6)

    # Deterministic parameter init (PyTorch nn.Linear-style uniform bounds).
    lim1 = 1.0 / math.sqrt(segment_embedding_dim)
    w1 = jax.random.uniform(ks[0], (segment_embedding_dim, hidden_dim),
                            jnp.float32, -lim1, lim1)
    b1 = jax.random.uniform(ks[1], (1, hidden_dim), jnp.float32, -lim1, lim1)
    lim2 = 1.0 / math.sqrt(hidden_dim)
    w2 = jax.random.uniform(ks[2], (hidden_dim, mask_embedding_dim * num_masks),
                            jnp.float32, -lim2, lim2)
    b2 = jax.random.uniform(ks[3], (1, mask_embedding_dim * num_masks),
                            jnp.float32, -lim2, lim2)

    mask_embeddings = jax.random.normal(ks[4], (B, segment_embedding_dim),
                                        jnp.float32)
    per_pixel_embeddings = jax.random.normal(
        ks[5], (B, mask_embedding_dim, H, W), jnp.float32)

    out = mask_predictor_forward(mask_embeddings, per_pixel_embeddings,
                                 (w1, b1, w2, b2), mask_embedding_dim, num_masks)
    jax.block_until_ready(out)

    # Pure-JAX f32 reference (same semantics as the PyTorch forward).
    h_ref = jnp.maximum(mask_embeddings @ w1 + b1, 0.0)
    e_ref = jnp.maximum(h_ref @ w2 + b2, 0.0).reshape(B, num_masks,
                                                      mask_embedding_dim)
    ref = jax.nn.sigmoid(jnp.einsum("bmc,bchw->bmhw", e_ref,
                                    per_pixel_embeddings))
    assert out.shape == (B, num_masks, H, W)
    # bf16 operands + bf16 sigmoid output -> loosened tolerance vs f32 ref.
    assert jnp.allclose(out.astype(jnp.float32), ref, atol=2e-2), \
        "mismatch vs reference"

    print("KERNEL_OK")
</pallas_src>

<mosaic_0001>
module attributes {stable_mosaic.version = 11 : i64} {
  func.func @mask_kernel(%arg0: i32, %arg1: i32, %arg2: memref<1x8x4xbf16, #tpu.memory_space<vmem>>, %arg3: memref<1x4x256xbf16, #tpu.memory_space<vmem>>, %arg4: memref<1x8x256xbf16, #tpu.memory_space<vmem>>) attributes {dimension_semantics = [#tpu.dimension_semantics<parallel>, #tpu.dimension_semantics<parallel>], iteration_bounds = array<i64: 2, 1>, scalar_prefetch = 0 : i64, scratch_operands = 0 : i64, tpu.core_type = #tpu.core_type<tc>, window_params = [{transform_indices = @transform_0, window_bounds = array<i64: 1, 8, 4>}, {transform_indices = @transform_1, window_bounds = array<i64: 1, 4, 256>}, {transform_indices = @transform_2, window_bounds = array<i64: 1, 8, 256>}]} {
    %c0 = arith.constant 0 : index
    %c0_0 = arith.constant 0 : index
    %c0_1 = arith.constant 0 : index
    %0 = vector.load %arg2[%c0, %c0_0, %c0_1] : memref<1x8x4xbf16, #tpu.memory_space<vmem>>, vector<1x8x4xbf16>
    %1 = vector.shape_cast %0 : vector<1x8x4xbf16> to vector<8x4xbf16>
    %c0_2 = arith.constant 0 : index
    %c0_3 = arith.constant 0 : index
    %c0_4 = arith.constant 0 : index
    %2 = vector.load %arg3[%c0_2, %c0_3, %c0_4] : memref<1x4x256xbf16, #tpu.memory_space<vmem>>, vector<1x4x256xbf16>
    %3 = vector.shape_cast %2 : vector<1x4x256xbf16> to vector<4x256xbf16>
    %cst = arith.constant dense<0.000000e+00> : vector<8x256xf32>
    %4 = tpu.matmul %1, %3, %cst {dimension_numbers = #tpu.dot_dimension_numbers<[1], [0], [0], [1], [0, 0, 1, 1], [], []>} : vector<8x4xbf16>, vector<4x256xbf16>, vector<8x256xf32> -> vector<8x256xf32>
    %5 = arith.negf %4 : vector<8x256xf32>
    %6 = math.exp %5 : vector<8x256xf32>
    %cst_5 = arith.constant 1.000000e+00 : f32
    %7 = vector.broadcast %cst_5 : f32 to vector<8x256xf32>
    %8 = arith.addf %7, %6 : vector<8x256xf32>
    %9 = arith.divf %7, %8 : vector<8x256xf32>
    %10 = arith.truncf %9 : vector<8x256xf32> to vector<8x256xbf16>
    %c0_6 = arith.constant 0 : index
    %c0_7 = arith.constant 0 : index
    %c0_8 = arith.constant 0 : index
    %11 = vector.load %arg4[%c0_6, %c0_7, %c0_8] : memref<1x8x256xbf16, #tpu.memory_space<vmem>>, vector<1x8x256xbf16>
    %12 = vector.shape_cast %11 : vector<1x8x256xbf16> to vector<8x256xbf16>
    %13 = vector.shape_cast %10 : vector<8x256xbf16> to vector<1x8x256xbf16>
    tpu.vector_store %arg4[%c0_6, %c0_7, %c0_8], %13 {strides = array<i32>} : memref<1x8x256xbf16, #tpu.memory_space<vmem>>, vector<1x8x256xbf16>,
    return
  }
  func.func @transform_0(%arg0: i32, %arg1: i32) -> (i32, i32, i32) {
    %c0_i32 = arith.constant 0 : i32
    %c0_i32_0 = arith.constant 0 : i32
    %c0_i32_1 = arith.constant 0 : i32
    return %arg0, %c0_i32, %c0_i32_0 : i32, i32, i32
  }
  func.func @transform_1(%arg0: i32, %arg1: i32) -> (i32, i32, i32) {
    %c0_i32 = arith.constant 0 : i32
    %c0_i32_0 = arith.constant 0 : i32
    return %arg0, %c0_i32, %arg1 : i32, i32, i32
  }
  func.func @transform_2(%arg0: i32, %arg1: i32) -> (i32, i32, i32) {
    %c0_i32 = arith.constant 0 : i32
    %c0_i32_0 = arith.constant 0 : i32
    return %arg0, %c0_i32, %arg1 : i32, i32, i32
  }
}

</mosaic_0001>

<llo_original>
// kernel: tpu_custom_call.1
$region0: #{tpu_custom_call.1}
  #allocation0 [shape = 'u32[]', space=smem, size = 0x4, offset = 0x4, fixed_abs, tag = 'smem constant byte address 0x4 - core index']
  #allocation1 [shape = 'u32[144,128]{1,0:T(1,128)}', space=vmem, size = 0x12000, scoped, tag = 'internal scratch']
  %s0 = inlined_call_operand.vmem [shape: bf16[2,8,4], index: 0, kind: input, shape index: {}]
  %s1 = inlined_call_operand.vmem [shape: bf16[2,4,256], index: 1, kind: input, shape index: {}]
  %s2 = inlined_call_operand.hbm [shape: bf16[2,8,256], index: 2, kind: output, shape index: {}]
  %s3 = sld [smem:[#allocation0]]
  $region41: #{tpu_custom_call.1} parent=0
    _
  %s5 = ssub.s32 1, %s3
  %s6 = scalar_select 0, %s5, %s3
  $region1: #{tpu_custom_call.1} parent=0
    #allocation2 [shape = 'u8[8192]{0}', space=vmem, size = 0x2000, scoped, tag = 'output window, operand 0']
    #allocation3 [shape = 's32[2]{0}', space=sflag, size = 0x8, scoped, tag = 'scoped memory for tpu_custom_call.1']
    %7 = vsyncpa [#allocation3], 0
    %s8 = scalar_lea.sflag [#allocation3], 1
    %9 = vsyncpa %s8, 0
    loop: start=0, step=1, limit=4
    $region2: #{tpu_custom_call.1} parent=1 // loop_pre_header
      _
    $region3: #{tpu_custom_call.1} parent=1 // loop_header
      %s11 = sphi 0, %s15
      %p12 = scmp.ge.s32.totalorder %s11, 4
      %s18 = sphi 0, %s30
      %s19 = sphi 0, %s26
      %s20 = sphi 0, %s18
      %s21 = sphi 0, %s19
      %s22 = sphi 0, %s20
      %s23 = sphi 0, %s21
      %s33 = sphi 0, %s35
      %s36 = sphi 0, %s33
      %s37 = sphi 0, %s36
      %s53 = sphi 0, %s37
      %s61 = sphi 0, %s63
      %s64 = sphi 0, %s61
      %s65 = sphi 0, %s64
      %s81 = sphi 0, %s65
      %s89 = sphi 0, %s91
      %s92 = sphi 0, %s89
      %s93 = sphi 0, %s92
      %s109 = sphi 0, %s93
    $region4: #{tpu_custom_call.1} parent=1 // loop_header_branch
      %14 = sbr.rel (%p12) target = $region8
    $region5: #{tpu_custom_call.1} parent=1 // loop_body
      %s16 = ssub.s32 %s11, 1
      %s17 = ssub.s32 %s11, 2
      %s24 = sadd.s32 1, %s19
      %p25 = scmp.ge.s32.totalorder %s24, 1
      %s26 = scalar_select %p25, 0, %s24
      %s27 = sadd.s32 1, %s18
      %s28 = scalar_select %p25, %s27, %s18
      %p29 = scmp.ge.s32.totalorder %s28, 2
      %s30 = scalar_select %p29, 0, %s28
      %s31 = ssub.s32 %s18, %s30
      %p32 = scmp.eq.s32.totalorder %s31, 0
      %s34 = sadd.s32 %s33, 1
      %s35 = scalar_select %p32, %s33, %s34
      %p38 = pneg %p32
      %p39 = scmp.eq.s32.totalorder %s11, 1
      %p40 = por %p38, %p39
      %p41 = scmp.ne.s32.totalorder %s33, %s36
      %p42 = scmp.eq.s32.totalorder %s11, 0
      %p43 = por %p41, %p42
      %p44 = scmp.ne.s32.totalorder %s33, %s36
      %p45 = scmp.eq.s32.totalorder %s16, 1
      %p46 = por %p44, %p45
      %p47 = scmp.ne.s32.totalorder %s36, %s37
      %p48 = scmp.eq.s32.totalorder %s16, 0
      %p49 = por %p47, %p48
      %p50 = scmp.ne.s32.totalorder %s36, %s37
      %p51 = scmp.eq.s32.totalorder %s17, 1
      %p52 = por %p50, %p51
      %p54 = scmp.ne.s32.totalorder %s37, %s53
      %p55 = scmp.eq.s32.totalorder %s17, 0
      %p56 = por %p54, %p55
      %s57 = ssub.s32 %s18, %s30
      %s58 = ssub.s32 %s19, %s26
      %s59 = sor.u32 %s57, %s58
      %p60 = scmp.eq.s32.totalorder %s59, 0
      %s62 = sadd.s32 %s61, 1
      %s63 = scalar_select %p60, %s61, %s62
      %p66 = pneg %p60
      %p67 = scmp.eq.s32.totalorder %s11, 1
      %p68 = por %p66, %p67
      %p69 = scmp.ne.s32.totalorder %s61, %s64
      %p70 = scmp.eq.s32.totalorder %s11, 0
      %p71 = por %p69, %p70
      %p72 = scmp.ne.s32.totalorder %s61, %s64
      %p73 = scmp.eq.s32.totalorder %s16, 1
      %p74 = por %p72, %p73
      %p75 = scmp.ne.s32.totalorder %s64, %s65
      %p76 = scmp.eq.s32.totalorder %s16, 0
      %p77 = por %p75, %p76
      %p78 = scmp.ne.s32.totalorder %s64, %s65
      %p79 = scmp.eq.s32.totalorder %s17, 1
      %p80 = por %p78, %p79
      %p82 = scmp.ne.s32.totalorder %s65, %s81
      %p83 = scmp.eq.s32.totalorder %s17, 0
      %p84 = por %p82, %p83
      %s85 = ssub.s32 %s18, %s30
      %s86 = ssub.s32 %s19, %s26
      %s87 = sor.u32 %s85, %s86
      %p88 = scmp.eq.s32.totalorder %s87, 0
      %s90 = sadd.s32 %s89, 1
      %s91 = scalar_select %p88, %s89, %s90
      %p94 = pneg %p88
      %p95 = scmp.eq.s32.totalorder %s11, 1
      %p96 = por %p94, %p95
      %p97 = scmp.ne.s32.totalorder %s89, %s92
      %p98 = scmp.eq.s32.totalorder %s11, 0
      %p99 = por %p97, %p98
      %p100 = scmp.ne.s32.totalorder %s89, %s92
      %p101 = scmp.eq.s32.totalorder %s16, 1
      %p102 = por %p100, %p101
      %p103 = scmp.ne.s32.totalorder %s92, %s93
      %p104 = scmp.eq.s32.totalorder %s16, 0
      %p105 = por %p103, %p104
      %p106 = scmp.ne.s32.totalorder %s92, %s93
      %p107 = scmp.eq.s32.totalorder %s17, 1
      %p108 = por %p106, %p107
      %p110 = scmp.ne.s32.totalorder %s93, %s109
      %p111 = scmp.eq.s32.totalorder %s17, 0
      %p112 = por %p110, %p111
      %p113 = scmp.le.s32.totalorder 1, %s11
      %p114 = scmp.lt.s32.totalorder %s11, 3
      %p115 = pnand %p113, %p114
      %p116 = pneg %p115
      // Predicated region
      $region9: #{tpu_custom_call.1} parent=5 // pred_check
        _
      $region10: #{tpu_custom_call.1} parent=5 // pred_check_branch
        %118 = sbr.rel (%p115) target = $region12
      $region11: #{tpu_custom_call.1} parent=5 // pred_region
        %s119 = ssub.s32 %s11, 1
      $region12: #{tpu_custom_call.1} parent=5 // pred_fallthru
        _
      %p120 = scmp.lt.s32.totalorder %s11, 2
      // Predicated region
      $region13: #{tpu_custom_call.1} parent=5 // pred_check
        %p121 = pneg %p120
      $region14: #{tpu_custom_call.1} parent=5 // pred_check_branch
        %123 = sbr.rel (%p121) target = $region16
      $region15: #{tpu_custom_call.1} parent=5 // pred_region
        // Predicated region
        $region17: #{tpu_custom_call.1} parent=15 // pred_check
          %p124 = pneg %p43
        $region18: #{tpu_custom_call.1} parent=15 // pred_check_branch
          %126 = sbr.rel (%p124) target = $region20
        $region19: #{tpu_custom_call.1} parent=15 // pred_region
          %p127 = scmp.lt.s32.totalorder %s18, 1
          %s128 = scalar_select %p127, %s18, 1
          %s129 = smul.addr %s128, 4
          %s130 = scalar_lea.vmem %s0, %s129
        $region20: #{tpu_custom_call.1} parent=15 // pred_fallthru
          _
        // Predicated region
        $region21: #{tpu_custom_call.1} parent=15 // pred_check
          %p131 = pneg %p71
        $region22: #{tpu_custom_call.1} parent=15 // pred_check_branch
          %133 = sbr.rel (%p131) target = $region24
        $region23: #{tpu_custom_call.1} parent=15 // pred_region
          %s134 = smul.u32 2, %s19
          %p135 = scmp.lt.s32.totalorder %s18, 1
          %s136 = scalar_select %p135, %s18, 1
          %p137 = scmp.lt.s32.totalorder %s134, 1
          %s138 = scalar_select %p137, %s134, 1
          %s139 = smul.addr %s136, 2
          %s140 = sadd.s32 %s138, %s139
          %s141 = smul.addr %s140, 2
          %s142 = scalar_lea.vmem %s1, %s141
          %s143 = smul.u32 2, %s19
        $region24: #{tpu_custom_call.1} parent=15 // pred_fallthru
          _
      $region16: #{tpu_custom_call.1} parent=5 // pred_fallthru
        _
      %p144 = scmp.le.s32.totalorder 1, %s11
      %p145 = scmp.lt.s32.totalorder %s11, 3
      %p146 = pnand %p144, %p145
      %p147 = pneg %p146
      // Predicated region
      $region25: #{tpu_custom_call.1} parent=5 // pred_check
        _
      $region26: #{tpu_custom_call.1} parent=5 // pred_check_branch
        %149 = sbr.rel (%p146) target = $region28
      $region27: #{tpu_custom_call.1} parent=5 // pred_region
        %s150 = ssub.s32 %s11, 1
        %p151 = scmp.lt.s32.totalorder %s20, 1
        %s152 = scalar_select %p151, %s20, 1
        %s153 = smul.addr %s152, 4
        %s154 = scalar_lea.vmem %s0, %s153
        %p155 = pneg %p49
        %p156 = pneg %p46
        %s157 = smul.u32 2, %s21
        %p158 = scmp.lt.s32.totalorder %s20, 1
        %s159 = scalar_select %p158, %s20, 1
        %p160 = scmp.lt.s32.totalorder %s157, 1
        %s161 = scalar_select %p160, %s157, 1
        %s162 = smul.addr %s159, 2
        %s163 = sadd.s32 %s161, %s162
        %s164 = smul.addr %s163, 2
        %s165 = scalar_lea.vmem %s1, %s164
        %p166 = pneg %p77
        %p167 = pneg %p74
        %p168 = pneg %p105
        %p169 = pneg %p102
        %s170 = sand.u32 %s92, 1
        %s171 = scalar_lea.sflag [#allocation3], %s170
        %s172 = sand.u32 %s92, 1
        %s173 = smul.addr %s172, 8
        %s174 = scalar_lea.vmem [#allocation2], %s173
        %p175 = scmp.lt.s32.totalorder %s20, 1
        %s176 = scalar_select %p175, %s20, 1
        %s177 = smul.addr %s176, 4
        %s178 = scalar_lea.vmem %s0, %s177
        %s179 = smul.u32 2, %s21
        %p180 = scmp.lt.s32.totalorder %s20, 1
        %s181 = scalar_select %p180, %s20, 1
        %p182 = scmp.lt.s32.totalorder %s179, 1
        %s183 = scalar_select %p182, %s179, 1
        %s184 = smul.addr %s181, 2
        %s185 = sadd.s32 %s183, %s184
        %s186 = smul.addr %s185, 2
        %s187 = scalar_lea.vmem %s1, %s186
        %s188 = smul.u32 2, %s21
        %s189 = smul.u32 2, %s21
        %v191 = vld [vmem:[%s178] sm:$0xf]
        %v192 = vld [vmem:[%s187] sm:$0xf]
        %v195 = vunpack.c.l.s4 1983009808
        %v196 = vunpack.c.0.s8 %v195
        %v197 = vlaneseq
        %v198 = vshrl.u32 %v197, 7
        %v199 = vsub.s32 %v196, %v198
        %v200 = vrot.slane %v192, %v199
        %v201 = vcombine.high %v200, %v200
        %vm202 = vcmask 31744
        %v204 = vsel %vm202, %v191, 0
        %vm206 = vcmask 1041408
        %v208 = vsel %vm206, %v200, 0
        %v211 = vsel %vm206, %v201, 0
        %213 = vmatprep.subr.bf16.mxu0 %v211
        %214 = vmatpush1.bf16.msra.mxu0 %v208
        %215 = vmatprep.subr.bf16.mxu0 0
        %216 = vmatpush1.bf16.msra.mxu0 0
        %217 = vmatprep.subr.bf16.mxu0 0
        %218 = vmatpush1.bf16.msra.mxu0 0
        %219 = vmatprep.subr.bf16.mxu0 0
        %220 = vmatpush1.bf16.msra.mxu0 0
        %221 = vmatprep.subr.bf16.mxu0 0
        %222 = vmatpush1.bf16.msra.mxu0 0
        %223 = vmatprep.subr.bf16.mxu0 0
        %224 = vmatpush1.bf16.msra.mxu0 0
        %225 = vmatprep.subr.bf16.mxu0 0
        %226 = vmatpush1.bf16.msra.mxu0 0
        %227 = vmatprep.subr.bf16.mxu0 0
        %228 = vmatpush1.bf16.msra.mxu0 0
        %229 = vmatprep.subr.bf16.mxu0 0
        %230 = vmatpush1.bf16.msra.mxu0 0
        %231 = vmatprep.subr.bf16.mxu0 0
        %232 = vmatpush1.bf16.msra.mxu0 0
        %233 = vmatprep.subr.bf16.mxu0 0
        %234 = vmatpush1.bf16.msra.mxu0 0
        %235 = vmatprep.subr.bf16.mxu0 0
        %236 = vmatpush1.bf16.msra.mxu0 0
        %237 = vmatprep.subr.bf16.mxu0 0
        %238 = vmatpush1.bf16.msra.mxu0 0
        %239 = vmatprep.subr.bf16.mxu0 0
        %240 = vmatpush1.bf16.msra.mxu0 0
        %241 = vmatprep.subr.bf16.mxu0 0
        %242 = vmatpush1.bf16.msra.mxu0 0
        %243 = vmatprep.subr.bf16.mxu0 0
        %244 = vmatpush1.bf16.msra.mxu0 0
        %245 = vmatprep.mubr.bf16.mxu0 0
        %246 = vmatmul.mubr.bf16.gmra.mrb[0].mxu0 %v204
        %v247 = vpop.f32.mrb[0].mxu0
        %v248 = vadd.f32 0.0, %v247
        %v249 = vpop.f32.mrb[0].mxu0
        %v250 = vadd.f32 0.0, %v249
        %v251 = vpop.f32.mrb[0].mxu0
        %v252 = vpop.f32.mrb[0].mxu0
        %253 = vdwg.mxu0
        %v254 = vxor.u32 %v248, 2147483648
        %v255 = vxor.u32 %v250, 2147483648
        %v256 = vmul.f32 %v254, 1.442695
        %v257 = vpow.pop %v256
        %v258 = vmul.f32 %v255, 1.442695
        %v259 = vpow.pop %v258
        %v260 = vadd.f32 %v257, 1.0
        %v261 = vadd.f32 %v259, 1.0
        %v262 = vrcp.pop %v260
        %v263 = vmul.f32 1.0, %v262
        %v264 = vrcp.pop %v261
        %v265 = vmul.f32 1.0, %v264
        %v266 = vpack.c.bf16 %v263, %v263
        %v267 = vpack.c.bf16 %v265, %v265
        %v270 = vunpack.c.l.b16 %v266
        %v271 = vunpack.c.l.b16 %v267
        %v272 = vpack.c.b16 %v271, %v270
        %274 = vst [vmem:[%s174] sm:$0xff] %v272
        %s275 = sand.u32 %s92, 1
        %s276 = scalar_lea.sflag [#allocation3], %s275
        %s277 = sand.u32 %s92, 1
        %s278 = smul.addr %s277, 8
        %s279 = scalar_lea.vmem [#allocation2], %s278
        // Predicated region
        $region29: #{tpu_custom_call.1} parent=27 // pred_check
          %p280 = pneg %p102
        $region30: #{tpu_custom_call.1} parent=27 // pred_check_branch
          %282 = sbr.rel (%p280) target = $region32
        $region31: #{tpu_custom_call.1} parent=27 // pred_region
          %s283 = smul.u32 2, %s21
          %s285 = ssub.s32 128, 128
          %286 = vsyncadd %s276, %s285
          %s287 = smul.addr %s20, 2
          %s288 = sadd.s32 %s283, %s287
          %s289 = smul.addr %s288, 64
          %s290 = scalar_lea.hbm %s2, %s289
          %s292 = sshll.u32 %s279, 4
          %s293 = int_to_ptr.vmem [resolvable:$true] %s292
          %295 = dma.vmem_to_hbm [thread:$0]  %s293, 128, %s290, %s276
        $region32: #{tpu_custom_call.1} parent=27 // pred_fallthru
          _
      $region28: #{tpu_custom_call.1} parent=5 // pred_fallthru
        _
      %p296 = scmp.le.s32.totalorder 2, %s11
      // Predicated region
      $region33: #{tpu_custom_call.1} parent=5 // pred_check
        %p297 = pneg %p296
      $region34: #{tpu_custom_call.1} parent=5 // pred_check_branch
        %299 = sbr.rel (%p297) target = $region36
      $region35: #{tpu_custom_call.1} parent=5 // pred_region
        %s300 = ssub.s32 %s11, 2
        // Predicated region
        $region37: #{tpu_custom_call.1} parent=35 // pred_check
          %p301 = pneg %p108
        $region38: #{tpu_custom_call.1} parent=35 // pred_check_branch
          %303 = sbr.rel (%p301) target = $region40
        $region39: #{tpu_custom_call.1} parent=35 // pred_region
          %s304 = sand.u32 %s93, 1
          %s305 = scalar_lea.sflag [#allocation3], %s304
          %s306 = sand.u32 %s93, 1
          %s307 = smul.addr %s306, 8
          %s308 = scalar_lea.vmem [#allocation2], %s307
          %309 = dma.done %s305, 128
        $region40: #{tpu_custom_call.1} parent=35 // pred_fallthru
          _
      $region36: #{tpu_custom_call.1} parent=5 // pred_fallthru
        _
    $region6: #{tpu_custom_call.1} parent=1 // loop_footer
      %s15 = sadd.s32 1, %s11
    $region7: #{tpu_custom_call.1} parent=1 // loop_footer_branch
      %10 = sbr.rel target = $region3
    $region8: #{tpu_custom_call.1} parent=1 // loop_exit
      _
    %310 = vsyncpa [#allocation3], 1
    %s311 = scalar_lea.sflag [#allocation3], 1
    %312 = vsyncpa %s311, 1

</llo_original>
